<compile_context>
chip_gen: v5e
topology: v5e:2x2
jax: 0.10.0
libtpu: 0.0.40
codegen_flags: <defaults>
</compile_context>

<pallas_src>
import functools

import jax
import jax.numpy as jnp
from jax.experimental import pallas as pl
from jax.experimental.pallas import tpu as pltpu

PRSI_DIM, TRSI_DIM, PM_DIM, VOL_DIM, TVOL_DIM, HIDDEN = 32, 8, 8, 8, 8, 4
PRSI2 = PRSI_DIM // 2                                           # 16
TSHAPE = 5 * HIDDEN                                             # 20
FEAT = PRSI_DIM + TRSI_DIM + PM_DIM + VOL_DIM + TVOL_DIM        # 64
PARAM_ROWS = 112                                                # packed parameter slab rows
OUT_LANES = 128                                                 # lane-dense packed output row


def _bit_investor_kernel(data_ref, wprev0_ref, params_ref, out_ref, wp_ref):
    """One (batch row, time-block) grid step: T_BLK recurrent timesteps."""
    b = pl.program_id(0)
    t_blk = data_ref.shape[0]

    relu = lambda v: jnp.maximum(v, 0.0)
    dot = lambda a, w: jnp.dot(a, w, preferred_element_type=jnp.float32)

    # Packed parameters (resident in VMEM for the whole grid; hoisted out of the time loop).
    w1 = params_ref[0:64, 0:32]        # [[W_prsi1, 0], [0, blockdiag(W_trsi, W_pm, W_vol, W_tvol)]]
    w2 = params_ref[64:96, 0:16]       # blockdiag(W_prsi2 -> lanes 0:4, Whr -> lanes 8:13)
    whp = params_ref[96:104, 0:8]      # [Ww|Wq|Wr] rows 0:4 of `bits` (prsi chunk), zero padded
    b1 = params_ref[104:105, 0:32]     # [b_prsi1(16) | b_trsi, b_pm, b_vol, b_tvol (16)]
    b2p = params_ref[105:106, 0:8]     # b_prsi2, lanes 4:8 zero
    headb = params_ref[106:107, 0:8]   # [b_wnet(2) | b_qnet(2) | 0 ...]
    br = params_ref[107:108, 0:1]      # b_renet

    # Recurrent carry (weights_prev): seed at the first time-block of each batch row; it then
    # persists in scratch across the "arbitrary" time-block grid axis.
    @pl.when(pl.program_id(1) == 0)
    def _seed():
        wp_ref[...] = wprev0_ref[pl.ds(b, 1), :]

    zero_pad = jnp.zeros((1, OUT_LANES - 9), jnp.float32)

    @pl.loop(0, t_blk)
    def _step(t):
        x = data_ref[pl.ds(t, 1), :]                       # (1, 64) = [prsi|trsi|pm|vol|tvol]

        # Stage 1: all five branch encoders in one MXU dot.
        h = relu(dot(x, w1) + b1)                          # (1, 32) = [h_prsi1(16) | h4(16)]
        # Stage 2: prsi_net2 and the h4 part of the heads in one MXU dot.
        r2 = dot(h, w2)                                    # (1, 16)
        h_prsi = relu(r2[:, 0:8] + b2p)                    # (1, 8), lanes 4:8 are exactly 0
        # Stage 3: finish the heads -> [wnet(2) | qnet(2) | bits@Wr (1) | 0 ...]
        head = dot(h_prsi, whp) + r2[:, 8:16] + headb      # (1, 8)

        wprev = wp_ref[...]                                # (1, 2) weights_prev for this step
        s = wprev[:, 0:1]

        # sel_rebalancing: renet(s * bits) = s * (bits @ Wr) + b_renet   (renet is affine)
        renet_out = s * head[:, 4:5] + br
        log_rebal = jnp.minimum(renet_out, 0.0)            # -relu(-x)
        # torch.round(exp(x)) on (0, 1] (round-half-to-even) == exp(x) > 0.5
        rebal = jnp.where(jnp.exp(log_rebal) > 0.5, 1.0, 0.0)   # (1, 1)

        wnet_out = head[:, 0:2]
        q_values = head[:, 2:4]
        sig = 1.0 / (1.0 + jnp.exp(-wnet_out))             # exact sigmoid (latency-bound anyway)
        wscores = sig * rebal
        wsum = jnp.sum(wscores, axis=-1, keepdims=True)
        safe_sum = jnp.where(wsum == 0.0, 1.0, wsum)       # guard the dead (rebal==0) branch
        weights = jnp.where(rebal > 0.5, wscores / safe_sum, jnp.zeros_like(wscores))
        nweights = wprev * (1.0 - rebal)

        # Carry for step t+1: rebalanced -> new normalized weights, else keep previous weights.
        wp_ref[...] = nweights + weights

        # Single lane-dense (1,128) store per step (no zero-init + masked sub-stores).
        packed = jnp.concatenate(
            [nweights, weights, wscores, q_values, rebal, zero_pad], axis=1)
        out_ref[pl.ds(t, 1), :] = packed


@functools.partial(jax.jit, static_argnames=("t_block",))
def bit_investor_sequence(data, wprev0, packed_params, *, t_block=8):
    """Runs the full (B, T) recurrence in one pallas_call.

    data:          (B, T, 64)  packed per-step features [prsi | trsi | pm | vol | tvol]
    wprev0:        (B, 2)      initial weights_prev per batch row
    packed_params: (112, 32)   slab from pack_params()
    returns:       (B, T, 128) packed rows: lanes 0:2 nweights, 2:4 weights, 4:6 wscores,
                   6:8 q_values, 8 rebal_msk   (i.e. rweights = lanes 0:4)
    """
    B, T, F = data.shape
    assert F == FEAT, F
    assert packed_params.shape == (PARAM_ROWS, 32), packed_params.shape
    assert wprev0.shape == (B, 2), wprev0.shape
    t_block = min(t_block, T)
    assert T % t_block == 0 and (t_block == T or t_block % 8 == 0), (T, t_block)

    grid = (B, T // t_block)
    return pl.pallas_call(
        _bit_investor_kernel,
        out_shape=jax.ShapeDtypeStruct((B, T, OUT_LANES), jnp.float32),
        grid_spec=pltpu.PrefetchScalarGridSpec(
            num_scalar_prefetch=0,
            grid=grid,
            in_specs=[
                # per-(b, time-block) feature slab
                pl.BlockSpec((None, t_block, FEAT), lambda b, t: (b, t, 0)),
                # initial weights_prev and the parameter slab stay resident (constant index map)
                pl.BlockSpec((B, 2), lambda b, t: (0, 0)),
                pl.BlockSpec((PARAM_ROWS, 32), lambda b, t: (0, 0)),
            ],
            out_specs=pl.BlockSpec((None, t_block, OUT_LANES), lambda b, t: (b, t, 0)),
            scratch_shapes=[pltpu.VMEM((1, 2), jnp.float32)],   # carried weights_prev
        ),
        compiler_params=pltpu.CompilerParams(
            # B shards across TensorCores; the time axis is a sequential carry.
            dimension_semantics=("parallel", "arbitrary"),
            # Blocks here are KiB-scale; 32 MiB is safe on v5e/v6e/v7x alike.
            vmem_limit_bytes=32 * 1024 * 1024,
        ),
    )(data, wprev0, packed_params)


def init_params(key):
    """Deterministic PyTorch-style (uniform +-1/sqrt(fan_in)) init, weights stored (in, out)."""
    def linear(k, fan_in, fan_out):
        kw, kb = jax.random.split(k)
        bound = 1.0 / float(fan_in) ** 0.5
        w = jax.random.uniform(kw, (fan_in, fan_out), jnp.float32, -bound, bound)
        b = jax.random.uniform(kb, (1, fan_out), jnp.float32, -bound, bound)
        return w, b

    ks = jax.random.split(key, 9)
    return {
        "prsi1": linear(ks[0], PRSI_DIM, PRSI2),
        "prsi2": linear(ks[1], PRSI2, HIDDEN),
        "trsi": linear(ks[2], TRSI_DIM, HIDDEN),
        "pm": linear(ks[3], PM_DIM, HIDDEN),
        "vol": linear(ks[4], VOL_DIM, HIDDEN),
        "tvol": linear(ks[5], TVOL_DIM, HIDDEN),
        "wnet": linear(ks[6], TSHAPE, 2),
        "qnet": linear(ks[7], TSHAPE, 2),
        "renet": linear(ks[8], TSHAPE, 1),
    }


def pack_params(params):
    """One-time host-side packing of all 18 weight/bias arrays into a (112, 32) slab."""
    w1, b1 = params["prsi1"]
    w2, b2 = params["prsi2"]
    wt, bt = params["trsi"]
    wpm, bpm = params["pm"]
    wv, bv = params["vol"]
    wtv, btv = params["tvol"]
    ww, bw = params["wnet"]
    wq, bq = params["qnet"]
    wr, br = params["renet"]

    p = jnp.zeros((PARAM_ROWS, 32), jnp.float32)
    # Stage 1: x(1,64) @ W1(64,32) with x = [prsi | trsi | pm | vol | tvol].
    p = p.at[0:32, 0:16].set(w1)
    p = p.at[32:40, 16:20].set(wt)
    p = p.at[40:48, 20:24].set(wpm)
    p = p.at[48:56, 24:28].set(wv)
    p = p.at[56:64, 28:32].set(wtv)
    # Stage 2: blockdiag(W_prsi2 -> out lanes 0:4, Whr -> out lanes 8:13).
    whr = jnp.concatenate([ww[HIDDEN:], wq[HIDDEN:], wr[HIDDEN:]], axis=1)   # (16, 5)
    whp = jnp.concatenate([ww[:HIDDEN], wq[:HIDDEN], wr[:HIDDEN]], axis=1)   # (4, 5)
    p = p.at[64:80, 0:4].set(w2)
    p = p.at[80:96, 8:13].set(whr)
    # Stage 3: head weights for the prsi chunk of `bits`.
    p = p.at[96:100, 0:5].set(whp)
    # Biases.
    p = p.at[104, 0:16].set(b1[0])
    p = p.at[104, 16:32].set(jnp.concatenate([bt[0], bpm[0], bv[0], btv[0]]))
    p = p.at[105, 0:4].set(b2[0])
    p = p.at[106, 0:2].set(bw[0])
    p = p.at[106, 2:4].set(bq[0])
    p = p.at[107, 0:1].set(br[0])
    return p


def pack_inputs(prsi, trsi, pm, vol, tvol):
    """(B,T,32) + 4x(B,T,8) -> (B,T,64), packed ONCE for the whole sequence."""
    return jnp.concatenate([prsi, trsi, pm, vol, tvol], axis=-1)


def unpack_outputs(out):
    """Packed (B,T,128) -> (rweights, wscores, q_values, rebal_msk) like the torch forward."""
    return out[..., 0:4], out[..., 4:6], out[..., 6:8], out[..., 8]


def reference_sequence(prsi, trsi, pm, vol, tvol, wprev0, params):
    """Pure-JAX mirror of the torch eval forward, unrolled over the same recurrence."""
    relu = lambda v: jnp.maximum(v, 0.0)
    sigmoid = lambda v: 1.0 / (1.0 + jnp.exp(-v))
    lin = lambda v, p: v @ p[0] + p[1]

    B, T = prsi.shape[0], prsi.shape[1]
    rows_all = []
    for bi in range(B):
        wprev = wprev0[bi:bi + 1]                                    # (1, 2)
        rows = []
        for t in range(T):
            hp = relu(lin(relu(lin(prsi[bi, t][None], params["prsi1"])), params["prsi2"]))
            ht = relu(lin(trsi[bi, t][None], params["trsi"]))
            hm = relu(lin(pm[bi, t][None], params["pm"]))
            hv = relu(lin(vol[bi, t][None], params["vol"]))
            htv = relu(lin(tvol[bi, t][None], params["tvol"]))
            bits = jnp.concatenate([hp, ht, hm, hv, htv], axis=1)
            log_rebal = -relu(-lin(wprev[0, 0] * bits, params["renet"]))
            rebal = jnp.round(jnp.exp(log_rebal))                    # (1, 1)
            wscores = sigmoid(lin(bits, params["wnet"])) * rebal
            q_values = lin(bits, params["qnet"])
            wsum = jnp.sum(wscores)
            weights = jnp.where(rebal > 0.5,
                                wscores / jnp.where(wsum == 0.0, 1.0, wsum),
                                jnp.zeros_like(wscores))
            nweights = wprev * (1.0 - rebal)
            rows.append(jnp.concatenate(
                [nweights, weights, wscores, q_values, rebal], axis=1)[0])
            wprev = nweights + weights
        rows_all.append(jnp.stack(rows))
    return jnp.stack(rows_all)                                       # (B, T, 9)


if __name__ == "__main__":
    key = jax.random.PRNGKey(0)
    pkey, dkey = jax.random.split(key)
    params = init_params(pkey)
    packed_params = pack_params(params)

    B, T = 2, 16
    ks = jax.random.split(dkey, 6)
    prsi = jax.random.normal(ks[0], (B, T, PRSI_DIM), jnp.float32)
    trsi = jax.random.normal(ks[1], (B, T, TRSI_DIM), jnp.float32)
    pm = jax.random.normal(ks[2], (B, T, PM_DIM), jnp.float32)
    vol = jax.random.normal(ks[3], (B, T, VOL_DIM), jnp.float32)
    tvol = jax.random.normal(ks[4], (B, T, TVOL_DIM), jnp.float32)
    wprev0 = jax.random.uniform(ks[5], (B, 2), jnp.float32)

    data = pack_inputs(prsi, trsi, pm, vol, tvol)        # one-time whole-sequence pack
    out = bit_investor_sequence(data, wprev0, packed_params, t_block=8)
    out = jax.block_until_ready(out)
    assert out.shape == (B, T, OUT_LANES)

    rweights, wscores, q_values, rebal_msk = unpack_outputs(out)
    assert rweights.shape == (B, T, 4) and wscores.shape == (B, T, 2)
    assert q_values.shape == (B, T, 2) and rebal_msk.shape == (B, T)

    # Sanity check vs. the pure-JAX reference running the identical recurrence.
    ref = reference_sequence(prsi, trsi, pm, vol, tvol, wprev0, params)
    assert jnp.allclose(out[..., :9], ref, atol=1e-3, rtol=1e-3), (out[..., :9], ref)

    print("KERNEL_OK")
</pallas_src>

<mosaic_0001>
module attributes {stable_mosaic.version = 11 : i64} {
  func.func @_bit_investor_kernel(%arg0: i32, %arg1: i32, %arg2: memref<1x8x64xf32, #tpu.memory_space<vmem>>, %arg3: memref<2x2xf32, #tpu.memory_space<vmem>>, %arg4: memref<112x32xf32, #tpu.memory_space<vmem>>, %arg5: memref<1x8x128xf32, #tpu.memory_space<vmem>>, %arg6: memref<1x2xf32, #tpu.memory_space<vmem>>) attributes {dimension_semantics = [#tpu.dimension_semantics<parallel>, #tpu.dimension_semantics<arbitrary>], iteration_bounds = array<i64: 2, 2>, scalar_prefetch = 0 : i64, scratch_operands = 1 : i64, tpu.core_type = #tpu.core_type<tc>, window_params = [{transform_indices = @transform_0, window_bounds = array<i64: 1, 8, 64>}, {pipeline_mode = #tpu.pipeline_mode<synchronous>, transform_indices = @transform_1, window_bounds = array<i64: 2, 2>}, {pipeline_mode = #tpu.pipeline_mode<synchronous>, transform_indices = @transform_2, window_bounds = array<i64: 112, 32>}, {transform_indices = @transform_3, window_bounds = array<i64: 1, 8, 128>}]} {
    %c0 = arith.constant 0 : index
    %c0_0 = arith.constant 0 : index
    %0 = vector.load %arg4[%c0, %c0_0] : memref<112x32xf32, #tpu.memory_space<vmem>>, vector<64x32xf32>
    %c64 = arith.constant 64 : index
    %c0_1 = arith.constant 0 : index
    %1 = vector.load %arg4[%c64, %c0_1] : memref<112x32xf32, #tpu.memory_space<vmem>>, vector<32x16xf32>
    %c96 = arith.constant 96 : index
    %c0_2 = arith.constant 0 : index
    %2 = vector.load %arg4[%c96, %c0_2] : memref<112x32xf32, #tpu.memory_space<vmem>>, vector<8x8xf32>
    %c104 = arith.constant 104 : index
    %c0_3 = arith.constant 0 : index
    %3 = vector.load %arg4[%c104, %c0_3] : memref<112x32xf32, #tpu.memory_space<vmem>>, vector<1x32xf32>
    %c105 = arith.constant 105 : index
    %c0_4 = arith.constant 0 : index
    %4 = vector.load %arg4[%c105, %c0_4] : memref<112x32xf32, #tpu.memory_space<vmem>>, vector<1x8xf32>
    %c106 = arith.constant 106 : index
    %c0_5 = arith.constant 0 : index
    %5 = vector.load %arg4[%c106, %c0_5] : memref<112x32xf32, #tpu.memory_space<vmem>>, vector<1x8xf32>
    %c107 = arith.constant 107 : index
    %c0_6 = arith.constant 0 : index
    %6 = vector.load %arg4[%c107, %c0_6] : memref<112x32xf32, #tpu.memory_space<vmem>>, vector<1x1xf32>
    %c0_i32 = arith.constant 0 : i32
    %7 = arith.cmpi eq, %arg1, %c0_i32 : i32
    %8 = arith.extui %7 : i1 to i32
    %c0_i32_7 = arith.constant 0 : i32
    %9 = arith.cmpi ne, %8, %c0_i32_7 : i32
    scf.if %9 {
      %12 = arith.index_cast %arg0 : i32 to index
      %c0_10 = arith.constant 0 : index
      %13 = vector.load %arg3[%12, %c0_10] : memref<2x2xf32, #tpu.memory_space<vmem>>, vector<1x2xf32>
      %c0_11 = arith.constant 0 : index
      %c0_12 = arith.constant 0 : index
      %14 = vector.load %arg6[%c0_11, %c0_12] : memref<1x2xf32, #tpu.memory_space<vmem>>, vector<1x2xf32>
      tpu.vector_store %arg6[%c0_11, %c0_12], %13 {strides = array<i32>} : memref<1x2xf32, #tpu.memory_space<vmem>>, vector<1x2xf32>,
    } else {
    }
    %cst = arith.constant 0.000000e+00 : f32
    %10 = vector.broadcast %cst : f32 to vector<1x119xf32>
    %c0_i32_8 = arith.constant 0 : i32
    %c8_i32 = arith.constant 8 : i32
    %11 = arith.addi %c0_i32_8, %c8_i32 : i32
    %c1_i32 = arith.constant 1 : i32
    scf.for %arg7 = %c0_i32_8 to %11 step %c1_i32  : i32 {
      %c1_i32_10 = arith.constant 1 : i32
      %12 = arith.muli %arg7, %c1_i32_10 : i32
      %c0_i32_11 = arith.constant 0 : i32
      %13 = arith.addi %c0_i32_11, %12 : i32
      %c0_12 = arith.constant 0 : index
      %14 = arith.index_cast %13 : i32 to index
      %c0_13 = arith.constant 0 : index
      %15 = vector.load %arg2[%c0_12, %14, %c0_13] : memref<1x8x64xf32, #tpu.memory_space<vmem>>, vector<1x1x64xf32>
      %16 = vector.shape_cast %15 : vector<1x1x64xf32> to vector<1x64xf32>
      %cst_14 = arith.constant dense<0.000000e+00> : vector<1x32xf32>
      %17 = tpu.matmul %16, %0, %cst_14 {dimension_numbers = #tpu.dot_dimension_numbers<[1], [0], [0], [1], [0, 0, 1, 1], [], []>} : vector<1x64xf32>, vector<64x32xf32>, vector<1x32xf32> -> vector<1x32xf32>
      %18 = arith.addf %17, %3 : vector<1x32xf32>
      %cst_15 = arith.constant 0.000000e+00 : f32
      %19 = vector.broadcast %cst_15 : f32 to vector<1x32xf32>
      %20 = arith.maximumf %18, %19 : vector<1x32xf32>
      %cst_16 = arith.constant dense<0.000000e+00> : vector<1x16xf32>
      %21 = tpu.matmul %20, %1, %cst_16 {dimension_numbers = #tpu.dot_dimension_numbers<[1], [0], [0], [1], [0, 0, 1, 1], [], []>} : vector<1x32xf32>, vector<32x16xf32>, vector<1x16xf32> -> vector<1x16xf32>
      %22 = vector.extract_strided_slice %21 {offsets = [0, 0], sizes = [1, 8], strides = [1, 1]} : vector<1x16xf32> to vector<1x8xf32>
      %23 = arith.addf %22, %4 : vector<1x8xf32>
      %cst_17 = arith.constant 0.000000e+00 : f32
      %24 = vector.broadcast %cst_17 : f32 to vector<1x8xf32>
      %25 = arith.maximumf %23, %24 : vector<1x8xf32>
      %cst_18 = arith.constant dense<0.000000e+00> : vector<1x8xf32>
      %26 = tpu.matmul %25, %2, %cst_18 {dimension_numbers = #tpu.dot_dimension_numbers<[1], [0], [0], [1], [0, 0, 1, 1], [], []>} : vector<1x8xf32>, vector<8x8xf32>, vector<1x8xf32> -> vector<1x8xf32>
      %27 = vector.extract_strided_slice %21 {offsets = [0, 8], sizes = [1, 8], strides = [1, 1]} : vector<1x16xf32> to vector<1x8xf32>
      %28 = arith.addf %26, %27 : vector<1x8xf32>
      %29 = arith.addf %28, %5 : vector<1x8xf32>
      %c0_19 = arith.constant 0 : index
      %c0_20 = arith.constant 0 : index
      %30 = vector.load %arg6[%c0_19, %c0_20] : memref<1x2xf32, #tpu.memory_space<vmem>>, vector<1x2xf32>
      %31 = vector.extract_strided_slice %30 {offsets = [0, 0], sizes = [1, 1], strides = [1, 1]} : vector<1x2xf32> to vector<1x1xf32>
      %32 = vector.extract_strided_slice %29 {offsets = [0, 4], sizes = [1, 1], strides = [1, 1]} : vector<1x8xf32> to vector<1x1xf32>
      %33 = arith.mulf %31, %32 : vector<1x1xf32>
      %34 = arith.addf %33, %6 : vector<1x1xf32>
      %cst_21 = arith.constant 0.000000e+00 : f32
      %35 = vector.broadcast %cst_21 : f32 to vector<1x1xf32>
      %36 = arith.minimumf %34, %35 : vector<1x1xf32>
      %37 = math.exp %36 : vector<1x1xf32>
      %cst_22 = arith.constant 5.000000e-01 : f32
      %38 = vector.broadcast %cst_22 : f32 to vector<1x1xf32>
      %39 = arith.cmpf ogt, %37, %38 : vector<1x1xf32>
      %cst_23 = arith.constant 1.000000e+00 : f32
      %cst_24 = arith.constant 0.000000e+00 : f32
      %40 = vector.broadcast %cst_23 : f32 to vector<1x1xf32>
      %41 = vector.broadcast %cst_24 : f32 to vector<1x1xf32>
      %42 = arith.select %39, %40, %41 : vector<1x1xi1>, vector<1x1xf32>
      %43 = vector.extract_strided_slice %29 {offsets = [0, 0], sizes = [1, 2], strides = [1, 1]} : vector<1x8xf32> to vector<1x2xf32>
      %44 = vector.extract_strided_slice %29 {offsets = [0, 2], sizes = [1, 2], strides = [1, 1]} : vector<1x8xf32> to vector<1x2xf32>
      %cst_25 = arith.constant 0.000000e+00 : f32
      %45 = vector.broadcast %cst_25 : f32 to vector<1x2xf32>
      %46 = arith.subf %45, %43 : vector<1x2xf32>
      %47 = math.exp %46 : vector<1x2xf32>
      %cst_26 = arith.constant 1.000000e+00 : f32
      %48 = vector.broadcast %cst_26 : f32 to vector<1x2xf32>
      %49 = arith.addf %48, %47 : vector<1x2xf32>
      %cst_27 = arith.constant 1.000000e+00 : f32
      %50 = vector.broadcast %cst_27 : f32 to vector<1x2xf32>
      %51 = arith.divf %50, %49 : vector<1x2xf32>
      %52 = vector.broadcast %42 : vector<1x1xf32> to vector<1x2xf32>
      %53 = arith.mulf %51, %52 : vector<1x2xf32>
      %cst_28 = arith.constant dense<0.000000e+00> : vector<1xf32>
      %54 = vector.multi_reduction <add>, %53, %cst_28 [1] : vector<1x2xf32> to vector<1xf32>
      %55 = vector.shape_cast %54 : vector<1xf32> to vector<1x1xf32>
      %cst_29 = arith.constant 0.000000e+00 : f32
      %56 = vector.broadcast %cst_29 : f32 to vector<1x1xf32>
      %57 = arith.cmpf oeq, %55, %56 : vector<1x1xf32>
      %cst_30 = arith.constant 1.000000e+00 : f32
      %58 = vector.broadcast %cst_30 : f32 to vector<1x1xf32>
      %59 = arith.select %57, %58, %55 : vector<1x1xi1>, vector<1x1xf32>
      %cst_31 = arith.constant 5.000000e-01 : f32
      %60 = vector.broadcast %cst_31 : f32 to vector<1x1xf32>
      %61 = arith.cmpf ogt, %42, %60 : vector<1x1xf32>
      %62 = vector.broadcast %59 : vector<1x1xf32> to vector<1x2xf32>
      %63 = arith.divf %53, %62 : vector<1x2xf32>
      %cst_32 = arith.constant 0.000000e+00 : f32
      %64 = vector.broadcast %cst_32 : f32 to vector<1x2xf32>
      %65 = vector.shape_cast %61 : vector<1x1xi1> to vector<1x1xi1>
      %66 = vector.broadcast %65 : vector<1x1xi1> to vector<1x2xi1>
      %67 = arith.select %66, %63, %64 : vector<1x2xi1>, vector<1x2xf32>
      %cst_33 = arith.constant 1.000000e+00 : f32
      %68 = vector.broadcast %cst_33 : f32 to vector<1x1xf32>
      %69 = arith.subf %68, %42 : vector<1x1xf32>
      %70 = vector.broadcast %69 : vector<1x1xf32> to vector<1x2xf32>
      %71 = arith.mulf %30, %70 : vector<1x2xf32>
      %72 = arith.addf %71, %67 : vector<1x2xf32>
      %c0_34 = arith.constant 0 : index
      %c0_35 = arith.constant 0 : index
      %73 = vector.load %arg6[%c0_34, %c0_35] : memref<1x2xf32, #tpu.memory_space<vmem>>, vector<1x2xf32>
      tpu.vector_store %arg6[%c0_34, %c0_35], %72 {strides = array<i32>} : memref<1x2xf32, #tpu.memory_space<vmem>>, vector<1x2xf32>,
      %74 = tpu.concatenate %71, %67, %53, %44, %42, %10 in 1 : vector<1x2xf32>, vector<1x2xf32>, vector<1x2xf32>, vector<1x2xf32>, vector<1x1xf32>, vector<1x119xf32> -> vector<1x128xf32>
      %c0_36 = arith.constant 0 : index
      %75 = arith.index_cast %13 : i32 to index
      %c0_37 = arith.constant 0 : index
      %76 = vector.load %arg5[%c0_36, %75, %c0_37] : memref<1x8x128xf32, #tpu.memory_space<vmem>>, vector<1x1x128xf32>
      %77 = vector.shape_cast %76 : vector<1x1x128xf32> to vector<1x128xf32>
      %78 = vector.shape_cast %74 : vector<1x128xf32> to vector<1x1x128xf32>
      tpu.vector_store %arg5[%c0_36, %75, %c0_37], %78 {strides = array<i32>} : memref<1x8x128xf32, #tpu.memory_space<vmem>>, vector<1x1x128xf32>,
    }
    %c8_i32_9 = arith.constant 8 : i32
    return
  }
  func.func @transform_0(%arg0: i32, %arg1: i32) -> (i32, i32, i32) {
    %c0_i32 = arith.constant 0 : i32
    %c0_i32_0 = arith.constant 0 : i32
    return %arg0, %arg1, %c0_i32 : i32, i32, i32
  }
  func.func @transform_1(%arg0: i32, %arg1: i32) -> (i32, i32) {
    %c0_i32 = arith.constant 0 : i32
    %c0_i32_0 = arith.constant 0 : i32
    %c0_i32_1 = arith.constant 0 : i32
    return %c0_i32, %c0_i32_0 : i32, i32
  }
  func.func @transform_2(%arg0: i32, %arg1: i32) -> (i32, i32) {
    %c0_i32 = arith.constant 0 : i32
    %c0_i32_0 = arith.constant 0 : i32
    %c0_i32_1 = arith.constant 0 : i32
    return %c0_i32, %c0_i32_0 : i32, i32
  }
  func.func @transform_3(%arg0: i32, %arg1: i32) -> (i32, i32, i32) {
    %c0_i32 = arith.constant 0 : i32
    %c0_i32_0 = arith.constant 0 : i32
    return %arg0, %arg1, %c0_i32 : i32, i32, i32
  }
}

</mosaic_0001>

<llo_original>
// kernel: bit_investor_sequence.1
$region0: #{bit_investor_sequence.1}
  #allocation0 [shape = 'u32[]', space=smem, size = 0x4, offset = 0x4, fixed_abs, tag = 'smem constant byte address 0x4 - core index']
  #allocation1 [shape = 'u32[72,128]{1,0:T(1,128)}', space=vmem, size = 0x9000, scoped, tag = 'internal scratch']
  #allocation2 [shape = 'f32[1,2]{1,0:T(1,128)}', space=vmem, size = 0x200, scoped, tag = 'scratch operand']
  %s0 = inlined_call_operand.vmem [shape: f32[2,16,64], index: 0, kind: input, shape index: {}]
  %s1 = inlined_call_operand.vmem [shape: f32[2,2], index: 1, kind: input, shape index: {}]
  %s2 = inlined_call_operand.vmem [shape: f32[112,32], index: 2, kind: input, shape index: {}]
  %s3 = inlined_call_operand.hbm [shape: f32[2,16,128], index: 3, kind: output, shape index: {}]
  %s4 = sld [smem:[#allocation0]]
  $region56: #{bit_investor_sequence.1} parent=0
    _
  %s6 = ssub.s32 1, %s4
  %s7 = scalar_select 0, %s6, %s4
  $region1: #{bit_investor_sequence.1} parent=0
    #allocation3 [shape = 'u8[8192]{0}', space=vmem, size = 0x2000, scoped, tag = 'output window, operand 0']
    #allocation4 [shape = 's32[2]{0}', space=sflag, size = 0x8, scoped, tag = 'scoped memory for bit_investor_sequence.1']
    %8 = vsyncpa [#allocation4], 0
    %s9 = scalar_lea.sflag [#allocation4], 1
    %10 = vsyncpa %s9, 0
    loop: start=0, step=1, limit=6
    $region2: #{bit_investor_sequence.1} parent=1 // loop_pre_header
      _
    $region3: #{bit_investor_sequence.1} parent=1 // loop_header
      %s12 = sphi 0, %s16
      %p13 = scmp.ge.s32.totalorder %s12, 6
      %s19 = sphi 0, %s31
      %s20 = sphi 0, %s27
      %s21 = sphi 0, %s19
      %s22 = sphi 0, %s20
      %s23 = sphi 0, %s21
      %s24 = sphi 0, %s22
      %s36 = sphi 0, %s38
      %s39 = sphi 0, %s36
      %s40 = sphi 0, %s39
      %s56 = sphi 0, %s40
      %s60 = sphi 0, %s60
      %s62 = sphi 0, %s60
      %s63 = sphi 0, %s62
      %s77 = sphi 0, %s63
      %s81 = sphi 0, %s81
      %s83 = sphi 0, %s81
      %s84 = sphi 0, %s83
      %s98 = sphi 0, %s84
      %s106 = sphi 0, %s108
      %s109 = sphi 0, %s106
      %s110 = sphi 0, %s109
      %s126 = sphi 0, %s110
    $region4: #{bit_investor_sequence.1} parent=1 // loop_header_branch
      %15 = sbr.rel (%p13) target = $region8
    $region5: #{bit_investor_sequence.1} parent=1 // loop_body
      %s17 = ssub.s32 %s12, 1
      %s18 = ssub.s32 %s12, 2
      %s25 = sadd.s32 1, %s20
      %p26 = scmp.ge.s32.totalorder %s25, 2
      %s27 = scalar_select %p26, 0, %s25
      %s28 = sadd.s32 1, %s19
      %s29 = scalar_select %p26, %s28, %s19
      %p30 = scmp.ge.s32.totalorder %s29, 2
      %s31 = scalar_select %p30, 0, %s29
      %s32 = ssub.s32 %s19, %s31
      %s33 = ssub.s32 %s20, %s27
      %s34 = sor.u32 %s32, %s33
      %p35 = scmp.eq.s32.totalorder %s34, 0
      %s37 = sadd.s32 %s36, 1
      %s38 = scalar_select %p35, %s36, %s37
      %p41 = pneg %p35
      %p42 = scmp.eq.s32.totalorder %s12, 3
      %p43 = por %p41, %p42
      %p44 = scmp.ne.s32.totalorder %s36, %s39
      %p45 = scmp.eq.s32.totalorder %s12, 0
      %p46 = por %p44, %p45
      %p47 = scmp.ne.s32.totalorder %s36, %s39
      %p48 = scmp.eq.s32.totalorder %s17, 3
      %p49 = por %p47, %p48
      %p50 = scmp.ne.s32.totalorder %s39, %s40
      %p51 = scmp.eq.s32.totalorder %s17, 0
      %p52 = por %p50, %p51
      %p53 = scmp.ne.s32.totalorder %s39, %s40
      %p54 = scmp.eq.s32.totalorder %s18, 3
      %p55 = por %p53, %p54
      %p57 = scmp.ne.s32.totalorder %s40, %s56
      %p58 = scmp.eq.s32.totalorder %s18, 0
      %p59 = por %p57, %p58
      %s61 = sadd.s32 %s60, 1
      %p64 = scmp.eq.s32.totalorder %s12, 3
      %p65 = scmp.ne.s32.totalorder %s60, %s62
      %p66 = scmp.eq.s32.totalorder %s12, 0
      %p67 = por %p65, %p66
      %p68 = scmp.ne.s32.totalorder %s60, %s62
      %p69 = scmp.eq.s32.totalorder %s17, 3
      %p70 = por %p68, %p69
      %p71 = scmp.ne.s32.totalorder %s62, %s63
      %p72 = scmp.eq.s32.totalorder %s17, 0
      %p73 = por %p71, %p72
      %p74 = scmp.ne.s32.totalorder %s62, %s63
      %p75 = scmp.eq.s32.totalorder %s18, 3
      %p76 = por %p74, %p75
      %p78 = scmp.ne.s32.totalorder %s63, %s77
      %p79 = scmp.eq.s32.totalorder %s18, 0
      %p80 = por %p78, %p79
      %s82 = sadd.s32 %s81, 1
      %p85 = scmp.eq.s32.totalorder %s12, 3
      %p86 = scmp.ne.s32.totalorder %s81, %s83
      %p87 = scmp.eq.s32.totalorder %s12, 0
      %p88 = por %p86, %p87
      %p89 = scmp.ne.s32.totalorder %s81, %s83
      %p90 = scmp.eq.s32.totalorder %s17, 3
      %p91 = por %p89, %p90
      %p92 = scmp.ne.s32.totalorder %s83, %s84
      %p93 = scmp.eq.s32.totalorder %s17, 0
      %p94 = por %p92, %p93
      %p95 = scmp.ne.s32.totalorder %s83, %s84
      %p96 = scmp.eq.s32.totalorder %s18, 3
      %p97 = por %p95, %p96
      %p99 = scmp.ne.s32.totalorder %s84, %s98
      %p100 = scmp.eq.s32.totalorder %s18, 0
      %p101 = por %p99, %p100
      %s102 = ssub.s32 %s19, %s31
      %s103 = ssub.s32 %s20, %s27
      %s104 = sor.u32 %s102, %s103
      %p105 = scmp.eq.s32.totalorder %s104, 0
      %s107 = sadd.s32 %s106, 1
      %s108 = scalar_select %p105, %s106, %s107
      %p111 = pneg %p105
      %p112 = scmp.eq.s32.totalorder %s12, 3
      %p113 = por %p111, %p112
      %p114 = scmp.ne.s32.totalorder %s106, %s109
      %p115 = scmp.eq.s32.totalorder %s12, 0
      %p116 = por %p114, %p115
      %p117 = scmp.ne.s32.totalorder %s106, %s109
      %p118 = scmp.eq.s32.totalorder %s17, 3
      %p119 = por %p117, %p118
      %p120 = scmp.ne.s32.totalorder %s109, %s110
      %p121 = scmp.eq.s32.totalorder %s17, 0
      %p122 = por %p120, %p121
      %p123 = scmp.ne.s32.totalorder %s109, %s110
      %p124 = scmp.eq.s32.totalorder %s18, 3
      %p125 = por %p123, %p124
      %p127 = scmp.ne.s32.totalorder %s110, %s126
      %p128 = scmp.eq.s32.totalorder %s18, 0
      %p129 = por %p127, %p128
      %p130 = scmp.le.s32.totalorder 1, %s12
      %p131 = scmp.lt.s32.totalorder %s12, 5
      %p132 = pnand %p130, %p131
      %p133 = pneg %p132
      // Predicated region
      $region9: #{bit_investor_sequence.1} parent=5 // pred_check
        _
      $region10: #{bit_investor_sequence.1} parent=5 // pred_check_branch
        %135 = sbr.rel (%p132) target = $region12
      $region11: #{bit_investor_sequence.1} parent=5 // pred_region
        %s136 = ssub.s32 %s12, 1
        // Predicated region
        $region13: #{bit_investor_sequence.1} parent=11 // pred_check
          %p137 = pneg %p73
        $region14: #{bit_investor_sequence.1} parent=11 // pred_check_branch
          %139 = sbr.rel (%p137) target = $region16
        $region15: #{bit_investor_sequence.1} parent=11 // pred_region
          _
        $region16: #{bit_investor_sequence.1} parent=11 // pred_fallthru
          _
        // Predicated region
        $region17: #{bit_investor_sequence.1} parent=11 // pred_check
          %p140 = pneg %p94
        $region18: #{bit_investor_sequence.1} parent=11 // pred_check_branch
          %142 = sbr.rel (%p140) target = $region20
        $region19: #{bit_investor_sequence.1} parent=11 // pred_region
          _
        $region20: #{bit_investor_sequence.1} parent=11 // pred_fallthru
          _
      $region12: #{bit_investor_sequence.1} parent=5 // pred_fallthru
        _
      %p143 = scmp.lt.s32.totalorder %s12, 4
      // Predicated region
      $region21: #{bit_investor_sequence.1} parent=5 // pred_check
        %p144 = pneg %p143
      $region22: #{bit_investor_sequence.1} parent=5 // pred_check_branch
        %146 = sbr.rel (%p144) target = $region24
      $region23: #{bit_investor_sequence.1} parent=5 // pred_region
        // Predicated region
        $region25: #{bit_investor_sequence.1} parent=23 // pred_check
          %p147 = pneg %p46
        $region26: #{bit_investor_sequence.1} parent=23 // pred_check_branch
          %149 = sbr.rel (%p147) target = $region28
        $region27: #{bit_investor_sequence.1} parent=23 // pred_region
          %p150 = scmp.lt.s32.totalorder %s19, 1
          %s151 = scalar_select %p150, %s19, 1
          %p152 = scmp.lt.s32.totalorder %s20, 1
          %s153 = scalar_select %p152, %s20, 1
          %s154 = smul.addr %s151, 2
          %s155 = sadd.s32 %s153, %s154
          %s156 = smul.addr %s155, 8
          %s157 = scalar_lea.vmem %s0, %s156
        $region28: #{bit_investor_sequence.1} parent=23 // pred_fallthru
          _
      $region24: #{bit_investor_sequence.1} parent=5 // pred_fallthru
        _
      %p158 = scmp.le.s32.totalorder 1, %s12
      %p159 = scmp.lt.s32.totalorder %s12, 5
      %p160 = pnand %p158, %p159
      %p161 = pneg %p160
      // Predicated region
      $region29: #{bit_investor_sequence.1} parent=5 // pred_check
        _
      $region30: #{bit_investor_sequence.1} parent=5 // pred_check_branch
        %163 = sbr.rel (%p160) target = $region32
      $region31: #{bit_investor_sequence.1} parent=5 // pred_region
        %s164 = ssub.s32 %s12, 1
        %p165 = scmp.lt.s32.totalorder %s21, 1
        %s166 = scalar_select %p165, %s21, 1
        %p167 = scmp.lt.s32.totalorder %s22, 1
        %s168 = scalar_select %p167, %s22, 1
        %s169 = smul.addr %s166, 2
        %s170 = sadd.s32 %s168, %s169
        %s171 = smul.addr %s170, 8
        %s172 = scalar_lea.vmem %s0, %s171
        %p173 = pneg %p52
        %p174 = pneg %p49
        %p175 = pneg %p73
        %p176 = pneg %p70
        %p177 = pneg %p94
        %p178 = pneg %p91
        %p179 = pneg %p122
        %p180 = pneg %p119
        %s181 = sand.u32 %s109, 1
        %s182 = scalar_lea.sflag [#allocation4], %s181
        %s183 = sand.u32 %s109, 1
        %s184 = smul.addr %s183, 8
        %s185 = scalar_lea.vmem [#allocation3], %s184
        %p186 = scmp.lt.s32.totalorder %s21, 1
        %s187 = scalar_select %p186, %s21, 1
        %p188 = scmp.lt.s32.totalorder %s22, 1
        %s189 = scalar_select %p188, %s22, 1
        %s190 = smul.addr %s187, 2
        %s191 = sadd.s32 %s189, %s190
        %s192 = smul.addr %s191, 8
        %s193 = scalar_lea.vmem %s0, %s192
        %v194 = vld [vmem:[%s2] sm:$0xff]
        %v195 = vld [vmem:[%s2 + $0x8] sm:$0xff]
        %v196 = vld [vmem:[%s2 + $0x10] sm:$0xff]
        %v197 = vld [vmem:[%s2 + $0x18] sm:$0xff]
        %v198 = vld [vmem:[%s2 + $0x20] sm:$0xff]
        %v199 = vld [vmem:[%s2 + $0x28] sm:$0xff]
        %v200 = vld [vmem:[%s2 + $0x30] sm:$0xff]
        %v201 = vld [vmem:[%s2 + $0x38] sm:$0xff]
        %v202 = vld [vmem:[%s2 + $0x40] sm:$0xff]
        %v203 = vld [vmem:[%s2 + $0x48] sm:$0xff]
        %v204 = vld [vmem:[%s2 + $0x50] sm:$0xff]
        %v205 = vld [vmem:[%s2 + $0x58] sm:$0xff]
        %v206 = vld [vmem:[%s2 + $0x60] sm:$0xff]
        %v207 = vld [vmem:[%s2 + $0x68] sm:$0x1]
        %v208 = vld [vmem:[%s2 + $0x69] sm:$0x1]
        %v209 = vld [vmem:[%s2 + $0x6a] sm:$0x1]
        %v210 = vld [vmem:[%s2 + $0x6b] sm:$0x1]
        %p211 = scmp.eq.s32.totalorder %s22, 0
        // Predicated region
        $region33: #{bit_investor_sequence.1} parent=31 // pred_check
          %p212 = pneg %p211
        $region34: #{bit_investor_sequence.1} parent=31 // pred_check_branch
          %214 = sbr.rel (%p212) target = $region36
        $region35: #{bit_investor_sequence.1} parent=31 // pred_region
          %s215 = scalar_lea.vmem %s1, %s21
          %v216 = vld [vmem:[%s215] sm:$0x1]
          %vm217 = vcmask 8192
          %218 = vst.msk [vmem:[#allocation2] sm:$0x1] %vm217, %v216
        $region36: #{bit_investor_sequence.1} parent=31 // pred_fallthru
          _
        loop: start=0, step=1, limit=8
        $region37: #{bit_investor_sequence.1} parent=31 // loop_pre_header
          _
        $region38: #{bit_investor_sequence.1} parent=31 // loop_header
          %s220 = sphi 0, %s224
          %p221 = scmp.ge.s32.totalorder %s220, 8
        $region39: #{bit_investor_sequence.1} parent=31 // loop_header_branch
          %223 = sbr.rel (%p221) target = $region43
        $region40: #{bit_investor_sequence.1} parent=31 // loop_body
          %s225 = scalar_lea.vmem %s193, %s220
          %v226 = vld [vmem:[%s225] sm:$0x1]
          %vm227 = vcmask 523264
          %v229 = vsel %vm227, %v226, 0
          %231 = vmatpush.msra.mxu0 0.0
          %232 = vmatpush.msra.mxu0 0.0
          %233 = vmatpush.msra.mxu0 0.0
          %234 = vmatpush.msra.mxu0 0.0
          %235 = vmatpush.msra.mxu0 0.0
          %236 = vmatpush.msra.mxu0 0.0
          %237 = vmatpush.msra.mxu0 0.0
          %238 = vmatpush.msra.mxu0 0.0
          %239 = vmatpush.msra.mxu0 %v201
          %240 = vmatpush.msra.mxu0 %v200
          %241 = vmatpush.msra.mxu0 %v199
          %242 = vmatpush.msra.mxu0 %v198
          %243 = vmatpush.msra.mxu0 %v197
          %244 = vmatpush.msra.mxu0 %v196
          %245 = vmatpush.msra.mxu0 %v195
          %246 = vmatpush.msra.mxu0 %v194
          %247 = vmatmul.f32.gmra.mxu0 %v229
          %v248 = vpop.f32.mrf.mxu0
          %v249 = vadd.f32 %v207, %v248
          %250 = vdwg.mxu0
          %v251 = vmax.f32 %v249, 0.0
          %vm252 = vcmask 261120
          %v254 = vsel %vm252, %v251, 0
          %256 = vmatpush.msra.mxu0 0.0
          %257 = vmatpush.msra.mxu0 0.0
          %258 = vmatpush.msra.mxu0 0.0
          %259 = vmatpush.msra.mxu0 0.0
          %260 = vmatpush.msra.mxu0 0.0
          %261 = vmatpush.msra.mxu0 0.0
          %262 = vmatpush.msra.mxu0 0.0
          %263 = vmatpush.msra.mxu0 0.0
          %264 = vmatpush.msra.mxu0 0.0
          %265 = vmatpush.msra.mxu0 0.0
          %266 = vmatpush.msra.mxu0 0.0
          %267 = vmatpush.msra.mxu0 0.0
          %268 = vmatpush.msra.mxu0 %v205
          %269 = vmatpush.msra.mxu0 %v204
          %270 = vmatpush.msra.mxu0 %v203
          %271 = vmatpush.msra.mxu0 %v202
          %272 = vmatmul.f32.gmra.mxu0 %v254
          %v273 = vpop.f32.mrf.mxu0
          %v274 = vadd.f32 0.0, %v273
          %275 = vdwg.mxu0
          %v276 = vadd.f32 %v274, %v208
          %v277 = vmax.f32 %v276, 0.0
          %279 = vrot.lane.b32.xlu0 %v274, 120
          %v280 = vpop.permute.xlu0 %279
          %vm282 = vcmask 64512
          %v284 = vsel %vm282, %v277, 0
          %286 = vmatpush.msra.mxu0 0.0
          %287 = vmatpush.msra.mxu0 0.0
          %288 = vmatpush.msra.mxu0 0.0
          %289 = vmatpush.msra.mxu0 0.0
          %290 = vmatpush.msra.mxu0 0.0
          %291 = vmatpush.msra.mxu0 0.0
          %292 = vmatpush.msra.mxu0 0.0
          %293 = vmatpush.msra.mxu0 0.0
          %294 = vmatpush.msra.mxu0 0.0
          %295 = vmatpush.msra.mxu0 0.0
          %296 = vmatpush.msra.mxu0 0.0
          %297 = vmatpush.msra.mxu0 0.0
          %298 = vmatpush.msra.mxu0 0.0
          %299 = vmatpush.msra.mxu0 0.0
          %300 = vmatpush.msra.mxu0 0.0
          %301 = vmatpush.msra.mxu0 %v206
          %302 = vmatmul.f32.gmra.mxu0 %v284
          %v303 = vpop.f32.mrf.mxu0
          %v304 = vadd.f32 %v280, %v303
          %305 = vdwg.mxu0
          %v306 = vadd.f32 %v304, %v209
          %v307 = vld [vmem:[#allocation2] sm:$0x1]
          %309 = vrot.lane.b32.xlu0 %v306, 124
          %v310 = vpop.permute.xlu0 %309
          %v312 = vmul.f32 %v307, %v310
          %v313 = vadd.f32 %v312, %v210
          %v314 = vmin.f32 %v313, 0.0
          %v315 = vmul.f32 %v314, 1.442695
          %v316 = vpow.pop %v315
          %vm317 = vcmp.gt.f32.partialorder %v316, 0.5
          %v318 = vsel %vm317, 1.0, 0.0
          %v319 = vsub.f32 0.0, %v306
          %v320 = vmul.f32 %v319, 1.442695
          %v321 = vpow.pop %v320
          %v322 = vadd.f32 %v321, 1.0
          %v323 = vrcp.pop %v322
          %v324 = vmul.f32 %v322, %v323
          %v325 = vsub.f32 1.0, %v324
          %v326 = vmul.f32 %v323, %v325
          %v327 = vadd.f32 %v323, %v326
          %vm328 = vweird.f32 %v322
          %vm329 = vweird.f32 %v323
          %vm330 = vmor %vm328, %vm329
          %v331 = vsel %vm330, %v323, %v327
          %v332 = vand.u32 2147483647, %v322
          %vm333 = vcmp.eq.f32.partialorder %v332, 8.507059e+37
          %v334 = vand.u32 %v322, 2147483648
          %v335 = vor.u32 1.1754944e-38, %v334
          %v336 = vsel %vm333, %v335, %v331
          %v337 = vmul.f32 1.0, %v336
          %339 = vset.pattern.permute.xlu0 0
          %340 = vperm.xlu0 %339, %v318
          %v341 = vpop.permute.xlu0 %340
          %v343 = vperm.slane %v341, 0
          %v344 = vmul.f32 %v337, %v343
          %vm345 = vcmask 8192
          %v346 = vsel %vm345, %v344, 0.0
          %347 = vadd.xlane.f32.xlu0 %v346
          %v348 = vpop.xlane.xlu0 %347
          %vm349 = vcmp.eq.f32.partialorder %v348, 0.0
          %v350 = vsel %vm349, 1.0, %v348
          %vm351 = vcmp.gt.f32.partialorder %v318, 0.5
          %v352 = vrcp.pop %v350
          %v353 = vmul.f32 %v350, %v352
          %v354 = vsub.f32 1.0, %v353
          %v355 = vmul.f32 %v352, %v354
          %v356 = vadd.f32 %v352, %v355
          %vm357 = vweird.f32 %v350
          %vm358 = vweird.f32 %v352
          %vm359 = vmor %vm357, %vm358
          %v360 = vsel %vm359, %v352, %v356
          %v361 = vand.u32 2147483647, %v350
          %vm362 = vcmp.eq.f32.partialorder %v361, 8.507059e+37
          %v363 = vand.u32 %v350, 2147483648
          %v364 = vor.u32 1.1754944e-38, %v363
          %v365 = vsel %vm362, %v364, %v360
          %v366 = vmul.f32 %v344, %v365
          %v367 = vsel %vm351, 1, 0
          %368 = vset.pattern.permute.xlu0 0
          %369 = vperm.xlu0 %368, %v367
          %v370 = vpop.permute.xlu0 %369
          %v371 = vperm.slane %v370, 0
          %vm372 = vcmp.eq.s32.totalorder %v371, 1
          %v373 = vsel %vm372, %v366, 0.0
          %v374 = vsub.f32 1.0, %v318
          %376 = vset.pattern.permute.xlu0 0
          %377 = vperm.xlu0 %376, %v374
          %v378 = vpop.permute.xlu0 %377
          %v380 = vperm.slane %v378, 0
          %v381 = vmul.f32 %v307, %v380
          %v382 = vadd.f32 %v381, %v373
          %383 = vst.msk [vmem:[#allocation2] sm:$0x1] %vm345, %v382
          %385 = vrot.lane.b32.xlu0 %v373, 2
          %v386 = vpop.permute.xlu0 %385
          %389 = vrot.lane.b32.xlu0 %v344, 4
          %v390 = vpop.permute.xlu0 %389
          %392 = vrot.lane.b32.xlu0 %v306, 4
          %v393 = vpop.permute.xlu0 %392
          %v395 = vperm.slane %v318, 0
          %396 = vrot.lane.b32.xlu0 %v395, 8
          %v397 = vpop.permute.xlu0 %396
          %vm399 = vcmask 15360
          %v400 = vsel %vm399, %v381, %v386
          %vm401 = vcmask 31744
          %v402 = vsel %vm401, %v400, %v390
          %vm403 = vcmask 48128
          %v404 = vsel %vm403, %v402, %v393
          %v405 = vsel %vm282, %v404, %v397
          %vm406 = vcmask 72704
          %v407 = vsel %vm406, %v405, 0.0
          %s408 = scalar_lea.vmem %s185, %s220 [#allocation3]
          %409 = vst [vmem:[%s408] sm:$0x1] %v407
        $region41: #{bit_investor_sequence.1} parent=31 // loop_footer
          %s224 = sadd.s32 1, %s220
        $region42: #{bit_investor_sequence.1} parent=31 // loop_footer_branch
          %219 = sbr.rel target = $region38
        $region43: #{bit_investor_sequence.1} parent=31 // loop_exit
          _
        %s410 = sand.u32 %s109, 1
        %s411 = scalar_lea.sflag [#allocation4], %s410
        %s412 = sand.u32 %s109, 1
        %s413 = smul.addr %s412, 8
        %s414 = scalar_lea.vmem [#allocation3], %s413
        // Predicated region
        $region44: #{bit_investor_sequence.1} parent=31 // pred_check
          %p415 = pneg %p119
        $region45: #{bit_investor_sequence.1} parent=31 // pred_check_branch
          %417 = sbr.rel (%p415) target = $region47
        $region46: #{bit_investor_sequence.1} parent=31 // pred_region
          %419 = vsyncadd %s411, 0
          %s420 = smul.addr %s21, 2
          %s421 = sadd.s32 %s22, %s420
          %s422 = smul.addr %s421, 8
          %s423 = scalar_lea.hbm %s3, %s422
          %s425 = sshll.u32 %s414, 4
          %s426 = int_to_ptr.vmem [resolvable:$true] %s425
          %s427 = sshll.u32 %s423, 4
          %s428 = int_to_ptr.hbm [resolvable:$true] %s427
          %430 = dma.vmem_to_hbm [thread:$0]  %s426, 128, %s428, %s411
        $region47: #{bit_investor_sequence.1} parent=31 // pred_fallthru
          _
      $region32: #{bit_investor_sequence.1} parent=5 // pred_fallthru
        _
      %p431 = scmp.le.s32.totalorder 2, %s12
      // Predicated region
      $region48: #{bit_investor_sequence.1} parent=5 // pred_check
        %p432 = pneg %p431
      $region49: #{bit_investor_sequence.1} parent=5 // pred_check_branch
        %434 = sbr.rel (%p432) target = $region51
      $region50: #{bit_investor_sequence.1} parent=5 // pred_region
        %s435 = ssub.s32 %s12, 2
        // Predicated region
        $region52: #{bit_investor_sequence.1} parent=50 // pred_check
          %p436 = pneg %p125
        $region53: #{bit_investor_sequence.1} parent=50 // pred_check_branch
          %438 = sbr.rel (%p436) target = $region55
        $region54: #{bit_investor_sequence.1} parent=50 // pred_region
          %s439 = sand.u32 %s110, 1
          %s440 = scalar_lea.sflag [#allocation4], %s439
          %s441 = sand.u32 %s110, 1
          %s442 = smul.addr %s441, 8
          %s443 = scalar_lea.vmem [#allocation3], %s442
          %445 = dma.done %s440, 128
        $region55: #{bit_investor_sequence.1} parent=50 // pred_fallthru
          _
      $region51: #{bit_investor_sequence.1} parent=5 // pred_fallthru
        _
    $region6: #{bit_investor_sequence.1} parent=1 // loop_footer
      %s16 = sadd.s32 1, %s12
    $region7: #{bit_investor_sequence.1} parent=1 // loop_footer_branch
      %11 = sbr.rel target = $region3
    $region8: #{bit_investor_sequence.1} parent=1 // loop_exit
      _
    %446 = vsyncpa [#allocation4], 1
    %s447 = scalar_lea.sflag [#allocation4], 1
    %448 = vsyncpa %s447, 1

</llo_original>
